<compile_context>
chip_gen: v5e
topology: v5e:2x2
jax: 0.10.0
libtpu: 0.0.40
codegen_flags: <defaults>
</compile_context>

<pallas_src>
import functools

import jax
import jax.numpy as jnp
from jax import lax
from jax.experimental import pallas as pl
from jax.experimental.pallas import tpu as pltpu

_LANES = 128


def _gan_loss_kernel(loss_name, target, scale, total, masked,
                     x_ref, o_ref):
    """One row-block of the flattened prediction -> partial loss sum.

    x_ref : (block_rows, 128) f32 lane-dense slab of prediction values.
    o_ref : (1, 1) f32 resident accumulator; scaled by `scale` on last step.
    """
    i = pl.program_id(0)

    @pl.when(i == 0)
    def _init():
        o_ref[...] = jnp.zeros_like(o_ref)

    x = x_ref[...]                                   # (BR, 128) f32

    if loss_name == 'lsgan':
        d = x - target
        per = d * d
    elif loss_name == 'vanilla':
        # BCEWithLogits, numerically stable form:
        #   max(x, 0) - x*t + log(1 + exp(-|x|))
        per = (jnp.maximum(x, 0.0) - x * target
               + jnp.log(1.0 + jnp.exp(-jnp.abs(x))))
    else:  # 'wgangp' : just the (signed) mean; sign folded into `scale`.
        per = x

    if masked:
        br, lanes = x.shape
        row = lax.broadcasted_iota(jnp.int32, x.shape, 0) + i * br
        lane = lax.broadcasted_iota(jnp.int32, x.shape, 1)
        valid = (row * lanes + lane) < total
        per = jnp.where(valid, per, 0.0)

    # Fused single-pass reduction: lane reduce then sublane reduce -> (1, 1).
    psum = jnp.sum(jnp.sum(per, axis=1, keepdims=True), axis=0, keepdims=True)
    o_ref[...] += psum

    @pl.when(i == pl.num_programs(0) - 1)
    def _finalize():
        # scale = sign / N  (sign is +/-1 only for wgangp, else +1)
        o_ref[...] = o_ref[...] * scale


def gan_loss(prediction, target_is_real, loss_name):
    """Pallas equivalent of GANLoss(loss_name)(prediction, target_is_real)."""
    if loss_name in ('lsgan', 'vanilla'):
        target = 1.0 if target_is_real else 0.0
        sign = 1.0
    elif loss_name == 'wgangp':
        target = 0.0
        sign = -1.0 if target_is_real else 1.0
    else:
        raise NotImplementedError(
            f'GAN loss name {loss_name} is not implemented!!!!')

    # Lane-dense flattening: (..., any shape) -> (rows_pad, 128) f32 slab.
    flat = prediction.astype(jnp.float32).reshape(-1)
    total = int(flat.shape[0])
    rows = pl.cdiv(total, _LANES)
    # rows per block: multiple of 8 (sublane), capped so one block is small
    # (512*128*4B = 256 KiB, well under VMEM even double-buffered).
    block_rows = min(((rows + 7) // 8) * 8, 512)
    rows_pad = ((rows + block_rows - 1) // block_rows) * block_rows
    pad = rows_pad * _LANES - total
    if pad:
        flat = jnp.pad(flat, (0, pad))
    x2d = flat.reshape(rows_pad, _LANES)
    grid = rows_pad // block_rows

    kernel = functools.partial(
        _gan_loss_kernel, loss_name, float(target),
        float(sign) / float(total), total, pad > 0)

    out = pl.pallas_call(
        kernel,
        out_shape=jax.ShapeDtypeStruct((1, 1), jnp.float32),
        grid_spec=pltpu.PrefetchScalarGridSpec(
            num_scalar_prefetch=0,
            grid=(grid,),
            in_specs=[pl.BlockSpec((block_rows, _LANES), lambda i: (i, 0))],
            out_specs=pl.BlockSpec((1, 1), lambda i: (0, 0)),
        ),
        compiler_params=pltpu.CompilerParams(
            dimension_semantics=("arbitrary",)),   # reduction over row blocks
    )(x2d)
    return out[0, 0]


def ref_gan_loss(prediction, target_is_real, loss_name):
    """Pure-JAX reference with the same semantics as the PyTorch module."""
    x = prediction.astype(jnp.float32)
    if loss_name == 'lsgan':
        t = 1.0 if target_is_real else 0.0
        return jnp.mean((x - t) ** 2)
    if loss_name == 'vanilla':
        t = 1.0 if target_is_real else 0.0
        return jnp.mean(jnp.maximum(x, 0.0) - x * t
                        + jnp.log1p(jnp.exp(-jnp.abs(x))))
    if loss_name == 'wgangp':
        m = jnp.mean(x)
        return -m if target_is_real else m
    raise NotImplementedError(loss_name)


if __name__ == "__main__":
    k1, k2 = jax.random.split(jax.random.PRNGKey(0))

    # Small discriminator-style prediction (batch=2, channels=4, 16x16 patch).
    pred = jax.random.normal(k1, (2, 4, 16, 16), jnp.float32)

    cases = [('lsgan', True), ('lsgan', False),
             ('vanilla', True), ('vanilla', False),
             ('wgangp', True), ('wgangp', False)]
    for name, real in cases:
        got = gan_loss(pred, real, name)
        jax.block_until_ready(got)
        want = ref_gan_loss(pred, real, name)
        assert jnp.allclose(got, want, atol=1e-4, rtol=1e-4), \
            (name, real, float(got), float(want))

    # Non-lane-aligned element count exercises the in-kernel validity mask.
    pred2 = jax.random.normal(k2, (2, 1, 15, 15), jnp.float32)
    for name, real in [('lsgan', True), ('vanilla', False), ('wgangp', True)]:
        got = gan_loss(pred2, real, name)
        jax.block_until_ready(got)
        want = ref_gan_loss(pred2, real, name)
        assert jnp.allclose(got, want, atol=1e-4, rtol=1e-4), \
            (name, real, float(got), float(want))

    print("KERNEL_OK")
</pallas_src>

<mosaic_0001>
module attributes {stable_mosaic.version = 11 : i64} {
  func.func @_gan_loss_kernel(%arg0: i32, %arg1: memref<16x128xf32, #tpu.memory_space<vmem>>, %arg2: memref<1x1xf32, #tpu.memory_space<vmem>>) attributes {dimension_semantics = [#tpu.dimension_semantics<arbitrary>], iteration_bounds = array<i64: 1>, scalar_prefetch = 0 : i64, scratch_operands = 0 : i64, tpu.core_type = #tpu.core_type<tc>, window_params = [{transform_indices = @transform_0, window_bounds = array<i64: 16, 128>}, {pipeline_mode = #tpu.pipeline_mode<synchronous>, transform_indices = @transform_1, window_bounds = array<i64: 1, 1>}]} {
    %c0_i32 = arith.constant 0 : i32
    %0 = arith.cmpi eq, %arg0, %c0_i32 : i32
    %1 = arith.extui %0 : i1 to i32
    %c0_i32_0 = arith.constant 0 : i32
    %2 = arith.cmpi ne, %1, %c0_i32_0 : i32
    scf.if %2 {
      %cst_10 = arith.constant 0.000000e+00 : f32
      %17 = vector.broadcast %cst_10 : f32 to vector<1x1xf32>
      %c0_11 = arith.constant 0 : index
      %c0_12 = arith.constant 0 : index
      %18 = vector.load %arg2[%c0_11, %c0_12] : memref<1x1xf32, #tpu.memory_space<vmem>>, vector<1x1xf32>
      tpu.vector_store %arg2[%c0_11, %c0_12], %17 {strides = array<i32>} : memref<1x1xf32, #tpu.memory_space<vmem>>, vector<1x1xf32>,
    } else {
    }
    %c0 = arith.constant 0 : index
    %c0_1 = arith.constant 0 : index
    %3 = vector.load %arg1[%c0, %c0_1] : memref<16x128xf32, #tpu.memory_space<vmem>>, vector<16x128xf32>
    %cst = arith.constant 1.000000e+00 : f32
    %4 = vector.broadcast %cst : f32 to vector<16x128xf32>
    %5 = arith.subf %3, %4 : vector<16x128xf32>
    %6 = arith.mulf %5, %5 : vector<16x128xf32>
    %cst_2 = arith.constant dense<0.000000e+00> : vector<16xf32>
    %7 = vector.multi_reduction <add>, %6, %cst_2 [1] : vector<16x128xf32> to vector<16xf32>
    %8 = vector.shape_cast %7 : vector<16xf32> to vector<16x1xf32>
    %cst_3 = arith.constant dense<0.000000e+00> : vector<1xf32>
    %9 = vector.multi_reduction <add>, %8, %cst_3 [0] : vector<16x1xf32> to vector<1xf32>
    %10 = vector.shape_cast %9 : vector<1xf32> to vector<1x1xf32>
    %c0_4 = arith.constant 0 : index
    %c0_5 = arith.constant 0 : index
    %11 = vector.load %arg2[%c0_4, %c0_5] : memref<1x1xf32, #tpu.memory_space<vmem>>, vector<1x1xf32>
    %12 = arith.addf %11, %10 : vector<1x1xf32>
    %c0_6 = arith.constant 0 : index
    %c0_7 = arith.constant 0 : index
    %13 = vector.load %arg2[%c0_6, %c0_7] : memref<1x1xf32, #tpu.memory_space<vmem>>, vector<1x1xf32>
    tpu.vector_store %arg2[%c0_6, %c0_7], %12 {strides = array<i32>} : memref<1x1xf32, #tpu.memory_space<vmem>>, vector<1x1xf32>,
    %c0_i32_8 = arith.constant 0 : i32
    %14 = arith.cmpi eq, %arg0, %c0_i32_8 : i32
    %15 = arith.extui %14 : i1 to i32
    %c0_i32_9 = arith.constant 0 : i32
    %16 = arith.cmpi ne, %15, %c0_i32_9 : i32
    scf.if %16 {
      %c0_10 = arith.constant 0 : index
      %c0_11 = arith.constant 0 : index
      %17 = vector.load %arg2[%c0_10, %c0_11] : memref<1x1xf32, #tpu.memory_space<vmem>>, vector<1x1xf32>
      %cst_12 = arith.constant 4.8828125E-4 : f32
      %18 = vector.broadcast %cst_12 : f32 to vector<1x1xf32>
      %19 = arith.mulf %17, %18 : vector<1x1xf32>
      %c0_13 = arith.constant 0 : index
      %c0_14 = arith.constant 0 : index
      %20 = vector.load %arg2[%c0_13, %c0_14] : memref<1x1xf32, #tpu.memory_space<vmem>>, vector<1x1xf32>
      tpu.vector_store %arg2[%c0_13, %c0_14], %19 {strides = array<i32>} : memref<1x1xf32, #tpu.memory_space<vmem>>, vector<1x1xf32>,
    } else {
    }
    return
  }
  func.func @transform_0(%arg0: i32) -> (i32, i32) {
    %c0_i32 = arith.constant 0 : i32
    %c0_i32_0 = arith.constant 0 : i32
    return %arg0, %c0_i32 : i32, i32
  }
  func.func @transform_1(%arg0: i32) -> (i32, i32) {
    %c0_i32 = arith.constant 0 : i32
    %c0_i32_0 = arith.constant 0 : i32
    %c0_i32_1 = arith.constant 0 : i32
    return %c0_i32, %c0_i32_0 : i32, i32
  }
}

</mosaic_0001>

<llo_original>
// kernel: tpu_custom_call.1
$region0: #{tpu_custom_call.1}
  #allocation0 [shape = 'u32[]', space=smem, size = 0x4, offset = 0x4, fixed_abs, tag = 'smem constant byte address 0x4 - core index']
  #allocation1 [shape = 'u32[72,128]{1,0:T(1,128)}', space=vmem, size = 0x9000, scoped, tag = 'internal scratch']
  %s0 = inlined_call_operand.hbm [shape: f32[16,128], index: 0, kind: input, shape index: {}]
  %s1 = inlined_call_operand.hbm [shape: f32[1,1], index: 1, kind: output, shape index: {}]
  %s2 = sld [smem:[#allocation0]]
  $region26: #{tpu_custom_call.1} parent=0
    _
  %s4 = ssub.s32 1, %s2
  %s5 = scalar_select 0, %s4, %s2
  $region1: #{tpu_custom_call.1} parent=0
    #allocation2 [shape = 'u8[8192]{0}', space=vmem, size = 0x2000, scoped, tag = 'input window, operand 0, single buffered']
    #allocation3 [shape = 's32[1]{0}', space=sflag, size = 0x4, scoped, tag = 'scoped memory for tpu_custom_call.1']
    #allocation4 [shape = 's32[1]{0}', space=sflag, size = 0x4, scoped, tag = 'scoped memory for tpu_custom_call.1']
    #allocation5 [shape = 'u8[512]{0}', space=vmem, size = 0x400, scoped, tag = 'output window, operand 0, single buffered']
    %6 = vsyncpa [#allocation3], 0
    %7 = vsyncpa [#allocation4], 0
    // Predicated region
    $region2: #{tpu_custom_call.1} parent=1 // pred_check
      _
    $region3: #{tpu_custom_call.1} parent=1 // pred_check_branch
      %9 = sbr.rel (0) target = $region5
    $region4: #{tpu_custom_call.1} parent=1 // pred_region
      %11 = vsyncadd [#allocation3], 0
      %s12 = sshll.u32 %s0, 4
      %s13 = int_to_ptr.hbm [resolvable:$true] %s12
      %s14 = sshll.u32 [#allocation2], 4
      %s15 = int_to_ptr.vmem [resolvable:$true] %s14
      %20 = dma.hbm_to_vmem [thread:$0]  %s13, 256, %s15, [#allocation3], 128, 128, 8
    $region5: #{tpu_custom_call.1} parent=1 // pred_fallthru
      _
    // Predicated region
    $region6: #{tpu_custom_call.1} parent=1 // pred_check
      _
    $region7: #{tpu_custom_call.1} parent=1 // pred_check_branch
      %22 = sbr.rel (0) target = $region9
    $region8: #{tpu_custom_call.1} parent=1 // pred_region
      %24 = dma.done [#allocation3], 256
    $region9: #{tpu_custom_call.1} parent=1 // pred_fallthru
      _
    %p25 = scmp.eq.s32.totalorder 0, 0
    // Predicated region
    $region10: #{tpu_custom_call.1} parent=1 // pred_check
      %p26 = pneg %p25
    $region11: #{tpu_custom_call.1} parent=1 // pred_check_branch
      %28 = sbr.rel (%p26) target = $region13
    $region12: #{tpu_custom_call.1} parent=1 // pred_region
      %vm29 = vcmask 0
      %30 = vst.msk [vmem:[#allocation5] sm:$0x1] %vm29, 0.0
    $region13: #{tpu_custom_call.1} parent=1 // pred_fallthru
      _
    %v31 = vld [vmem:[#allocation2] sm:$0xff]
    %v32 = vld [vmem:[#allocation2 + $0x8] sm:$0xff]
    %v33 = vsub.f32 %v31, 1.0
    %v34 = vsub.f32 %v32, 1.0
    %v35 = vmul.f32 %v33, %v33
    %v36 = vmul.f32 %v34, %v34
    %37 = vadd.xlane.f32.xlu0 %v35
    %v38 = vpop.xlane.xlu0 %37
    %39 = vadd.xlane.f32.xlu0 %v36
    %v40 = vpop.xlane.xlu0 %39
    %v41 = vadd.f32 %v38, %v40
    %v42 = vrot.slane %v41, 4
    %v43 = vadd.f32 %v41, %v42
    %v44 = vrot.slane %v43, 2
    %v45 = vadd.f32 %v43, %v44
    %v46 = vrot.slane %v45, 1
    %v47 = vadd.f32 %v45, %v46
    %v48 = vld [vmem:[#allocation5] sm:$0x1]
    %v49 = vadd.f32 %v48, %v47
    %vm50 = vcmask 0
    %51 = vst.msk [vmem:[#allocation5] sm:$0x1] %vm50, %v49
    // Predicated region
    $region14: #{tpu_custom_call.1} parent=1 // pred_check
      %p52 = pneg %p25
    $region15: #{tpu_custom_call.1} parent=1 // pred_check_branch
      %54 = sbr.rel (%p52) target = $region17
    $region16: #{tpu_custom_call.1} parent=1 // pred_region
      %v55 = vld [vmem:[#allocation5] sm:$0x1]
      %v56 = vmul.f32 %v55, 0.00048828125
      %57 = vst.msk [vmem:[#allocation5] sm:$0x1] %vm50, %v56
    $region17: #{tpu_custom_call.1} parent=1 // pred_fallthru
      _
    // Predicated region
    $region18: #{tpu_custom_call.1} parent=1 // pred_check
      _
    $region19: #{tpu_custom_call.1} parent=1 // pred_check_branch
      %59 = sbr.rel (0) target = $region21
    $region20: #{tpu_custom_call.1} parent=1 // pred_region
      %61 = vsyncadd [#allocation4], 0
      %s63 = sshll.u32 [#allocation5], 4
      %s64 = int_to_ptr.vmem [resolvable:$true] %s63
      %s65 = sshll.u32 %s1, 4
      %s66 = int_to_ptr.hbm [resolvable:$true] %s65
      %68 = dma.vmem_to_hbm [thread:$0]  %s64, 16, %s66, [#allocation4]
    $region21: #{tpu_custom_call.1} parent=1 // pred_fallthru
      _
    // Predicated region
    $region22: #{tpu_custom_call.1} parent=1 // pred_check
      _
    $region23: #{tpu_custom_call.1} parent=1 // pred_check_branch
      %70 = sbr.rel (0) target = $region25
    $region24: #{tpu_custom_call.1} parent=1 // pred_region
      %72 = dma.done [#allocation4], 16
    $region25: #{tpu_custom_call.1} parent=1 // pred_fallthru
      _
    %73 = vsyncpa [#allocation3], 1
    %74 = vsyncpa [#allocation4], 1

</llo_original>
